<compile_context>
chip_gen: v7x
topology: tpu7x:2x2x1
jax: 0.10.0
libtpu: 0.0.40
codegen_flags: <defaults>
</compile_context>

<pallas_src>
import functools
import math

import jax
import jax.numpy as jnp
from jax.experimental import pallas as pl
from jax.experimental.pallas import tpu as pltpu

MAX_VAL = 1000000000000.0


# ------------------------------ tiling helpers ------------------------------
def _vmem_limit_and_budget():
    """Scoped-VMEM limit to request and the working-set budget used for tiling."""
    cap = 64 * 1024 * 1024                       # conservative fallback (v7x physical)
    try:
        info = pltpu.get_tpu_info()
        cap = int(getattr(info, "vmem_capacity_bytes", cap)) or cap
    except Exception:
        pass
    limit = min(cap * 3 // 4, 96 * 1024 * 1024)   # stay well below physical VMEM
    budget = limit * 3 // 4                       # headroom for Mosaic internals
    return int(limit), int(budget)


def _pick_tile(n, max_tile):
    """Largest divisor of n that is <= max_tile; prefer >=2 (even) grid steps so
    both v7x TensorCores get work (on single-TC chips the cost is ~0.35us/step)."""
    max_tile = max(1, min(int(max_tile), n))
    ok = [t for t in range(1, n + 1) if n % t == 0 and t <= max_tile]
    two = [t for t in ok if n // t >= 2]
    even = [t for t in two if (n // t) % 2 == 0]
    if even:
        return max(even)
    if two:
        return max(two)
    return max(ok)


# --------------------------- global attention kernel ------------------------
def _global_attn_kernel(q_ref, k_ref, v_ref, mult_ref, bias_ref, out_ref, p_ref):
    # q/k/v arrive in bf16 (native MXU dtype); accumulation is f32.
    q = q_ref[...]                              # (G, l, d_k)
    k = k_ref[...]                              # (G, l, d_k)
    v = v_ref[...]                              # (G, l, d_k)
    mult = mult_ref[...]                        # (l, l): 1/sqrt(d_k) kept, 0 masked
    bias = bias_ref[...]                        # (l, l): 0 kept, -MAX_VAL masked

    scores = jnp.einsum("gqd,gkd->gqk", q, k,
                        preferred_element_type=jnp.float32)
    # Exact masked_fill semantics (masked scores become exactly -MAX_VAL) with
    # the 1/sqrt(d_k) scale folded into the multiplicative mask: one vmul + one
    # vadd instead of scale-mul + compare + select.
    scores = scores * mult[None, :, :] + bias[None, :, :]

    scores = scores - jnp.max(scores, axis=-1, keepdims=True)
    e = jnp.exp(scores)
    denom = jnp.sum(e, axis=-1, keepdims=True)
    # Exact division: p_attn is part of the module's return value, so the rows
    # must sum to 1 (an approx EUP reciprocal would leave ~1e-3 error in p).
    p = e / denom
    # TODO(synk): dropout on the attention probabilities is treated as identity
    # (eval mode / p=0).

    out_ref[...] = jnp.einsum("gqk,gkd->gqd", p.astype(v.dtype), v,
                              preferred_element_type=jnp.float32
                              ).astype(out_ref.dtype)
    p_ref[...] = p.astype(p_ref.dtype)
    # TODO(synk): for long sequences a flash-style KV-tiled online softmax (no
    # materialized (l, l) probabilities) would bound VMEM; here p_attn is part
    # of the module's return value, so the full tile is kept and bg_tile is
    # bounded by the per-generation VMEM budget in the wrapper instead.


def global_attention(q, k, v, mask2d, *, bg_tile=None):
    b, g, l, dk = q.shape
    bg = b * g
    scale = 1.0 / math.sqrt(dk)

    vmem_limit, vmem_budget = _vmem_limit_and_budget()
    if bg_tile is None:
        # Per-head-slice VMEM footprint (double-buffered blocks + in-kernel temps).
        per_bg = (3 * 2 * l * dk * 2      # q, k, v   (bf16, x2 buffers)
                  + 2 * l * dk * 4        # out       (f32, x2 buffers)
                  + 2 * l * l * 4         # p_attn    (f32, x2 buffers)
                  + 3 * l * l * 4         # scores / exp / bf16-p temporaries
                  + 2 * l * dk * 4)       # headroom
        fixed = 2 * 2 * l * l * 4         # resident mult/bias mask tiles
        bg_tile = _pick_tile(bg, max(1, (vmem_budget - fixed) // per_bg))
    assert bg % bg_tile == 0

    # bf16 MXU operands (f32 accumulate stays in the kernel); also halves the
    # q/k/v HBM -> VMEM traffic.
    qf = q.reshape(bg, l, dk).astype(jnp.bfloat16)
    kf = k.reshape(bg, l, dk).astype(jnp.bfloat16)
    vf = v.reshape(bg, l, dk).astype(jnp.bfloat16)

    keep = (mask2d != 0).astype(jnp.float32)
    mult = keep * scale                       # folds the 1/sqrt(d_k) scale
    bias = (1.0 - keep) * (-MAX_VAL)          # masked entries -> exactly -MAX_VAL

    out, p = pl.pallas_call(
        _global_attn_kernel,
        grid=(bg // bg_tile,),
        in_specs=[
            pl.BlockSpec((bg_tile, l, dk), lambda i: (i, 0, 0)),
            pl.BlockSpec((bg_tile, l, dk), lambda i: (i, 0, 0)),
            pl.BlockSpec((bg_tile, l, dk), lambda i: (i, 0, 0)),
            pl.BlockSpec((l, l), lambda i: (0, 0)),     # resident across the grid
            pl.BlockSpec((l, l), lambda i: (0, 0)),     # resident across the grid
        ],
        out_specs=(
            pl.BlockSpec((bg_tile, l, dk), lambda i: (i, 0, 0)),
            pl.BlockSpec((bg_tile, l, l), lambda i: (i, 0, 0)),
        ),
        out_shape=(
            jax.ShapeDtypeStruct((bg, l, dk), jnp.float32),
            jax.ShapeDtypeStruct((bg, l, l), jnp.float32),
        ),
        compiler_params=pltpu.CompilerParams(
            dimension_semantics=("parallel",),
            vmem_limit_bytes=vmem_limit),
    )(qf, kf, vf, mult, bias)
    # TODO(synk): with d_k=8 the attention output is lane-sparse (8/128 lanes per
    # store); lane-dense packing of (l, d_k) needs an in-kernel sublane->lane
    # relayout that is deferred.
    return out.reshape(b, g, l, dk), p.reshape(b, g, l, l)


# ---------------------------- fused local GRU kernel ------------------------
def _fused_local_gru_kernel(v_ref, wih_ref, whh_ref, bi_ref, bhn_ref, out_ref,
                            gi_ref, *, T, L, N, D, G):
    # v_ref   : (ROWS_PAD, D)   padded values, rows ordered (position, batch, head)
    #                           so the GRU window at step t is the CONTIGUOUS row
    #                           range [t*N, t*N + L*N)  -- no per-step reshapes.
    # wih_ref : (G, D, 3D)      gate-fused input weights (columns = r | z | n)
    # whh_ref : (G, D, 3D)      gate-fused hidden weights
    # bi_ref  : (G, 1, 3D)      b_ih with the hidden r/z biases folded in
    # bhn_ref : (G, 1, D)       hidden n-gate bias (must stay inside r * (.))
    # out_ref : (G, ROWS, D)    final hidden state per chain
    # gi_ref  : (G, ROWS_PAD, 3D)  VMEM scratch: hoisted input projection
    ROWS = L * N

    # Matmuls stay f32: at D=8 a bf16 cast does not reduce MXU passes (single
    # pass either way) and the recurrence numerics match the PyTorch reference.
    x = v_ref[...].astype(jnp.float32)                       # (ROWS_PAD, D)

    # Hoisted, gate-fused input projection: every padded position is projected
    # exactly once (one (ROWS_PAD, D) @ (D, 3D) matmul per GRU), staged in VMEM;
    # the recurrence only re-reads contiguous windows of it.
    for g in range(G):
        wih = wih_ref[g].astype(jnp.float32)                  # (D, 3D)
        gi_ref[g] = (jnp.dot(x, wih, preferred_element_type=jnp.float32)
                     + bi_ref[g].astype(jnp.float32))

    whh = [whh_ref[g].astype(jnp.float32) for g in range(G)]
    bhn = [jnp.broadcast_to(bhn_ref[g].astype(jnp.float32), (ROWS, D))
           for g in range(G)]
    hs = [jnp.zeros((ROWS, D), jnp.float32) for _ in range(G)]

    # PyTorch nn.GRU cell, gate order (r, z, n), h_0 = 0, return h_T.
    # Window direction matches the spec's distance = pos_l + pos_r: the chain at
    # position p consumes the right-zero-padded values at positions p..p+T-1.
    # T is small & static -> fully unrolled; the G chains are independent so the
    # scheduler can interleave their MXU/EUP work and hide the serial latency.
    for t in range(T):
        for g in range(G):
            gi_t = gi_ref[g, t * N:t * N + ROWS, :]           # static window slice
            gh = jnp.dot(hs[g], whh[g], preferred_element_type=jnp.float32)
            r = jax.nn.sigmoid(gi_t[:, 0:D] + gh[:, 0:D])
            z = jax.nn.sigmoid(gi_t[:, D:2 * D] + gh[:, D:2 * D])
            n = jnp.tanh(gi_t[:, 2 * D:3 * D] + r * (gh[:, 2 * D:3 * D] + bhn[g]))
            hs[g] = (1.0 - z) * n + z * hs[g]

    for g in range(G):
        out_ref[g] = hs[g].astype(out_ref.dtype)
    # TODO(synk): with d_k=8 the stores are lane-sparse (8/128 lanes); lane-dense
    # repacking of the (ROWS, D) result needs a sublane->lane relayout (deferred).


def fused_local_gru(v_local, gru_wih, gru_whh, gru_bi, gru_bhn, *,
                    init_val, b_tile=None, g_tile=None):
    # v_local: (b, ln, l, dk); GRU params stacked over local_num GRUs.
    b, ln, l, dk = v_local.shape
    local_num = gru_wih.shape[0]
    T = init_val + 1
    l_pad = l + init_val

    if g_tile is None:
        # >=2 interleaved GRU chains per grid step when possible.
        g_tile = 2 if (local_num >= 2 and local_num % 2 == 0) else 1
    assert local_num % g_tile == 0

    vmem_limit, vmem_budget = _vmem_limit_and_budget()
    if b_tile is None:
        per_b = (2 * ln * l_pad * dk * 4             # padded value rows (x2 buffers)
                 + g_tile * ln * l_pad * 3 * dk * 4  # gi scratch (single buffer)
                 + 2 * g_tile * ln * l * dk * 4      # outputs (x2 buffers)
                 + 8 * g_tile * ln * l * dk * 4)     # h / gate temporaries
        b_tile = _pick_tile(b, max(1, vmem_budget // per_b))
    assert b % b_tile == 0

    nb = b // b_tile
    ng = local_num // g_tile
    N = b_tile * ln
    ROWS = l * N
    ROWS_PAD = l_pad * N

    # Zero-pad init_val future positions, then reorder rows to
    # (position, batch-in-tile, local head) so the step-t window is the
    # contiguous row range [t*N, t*N + ROWS).  (Layout plumbing in the wrapper;
    # the kernel itself does no transposes and no per-step relayouts.)
    v_pad = jnp.concatenate(
        [v_local, jnp.zeros((b, ln, init_val, dk), v_local.dtype)], axis=-2)
    v_rows = v_pad.reshape(nb, b_tile, ln, l_pad, dk)
    v_rows = jnp.transpose(v_rows, (0, 3, 1, 2, 4)).reshape(nb, ROWS_PAD, dk)

    kernel = functools.partial(_fused_local_gru_kernel,
                               T=T, L=l, N=N, D=dk, G=g_tile)
    out = pl.pallas_call(
        kernel,
        grid=(nb, ng),
        in_specs=[
            # value rows: independent of the GRU axis -> stays resident across ig
            pl.BlockSpec((None, ROWS_PAD, dk), lambda ib, ig: (ib, 0, 0)),
            pl.BlockSpec((g_tile, dk, 3 * dk), lambda ib, ig: (ig, 0, 0)),
            pl.BlockSpec((g_tile, dk, 3 * dk), lambda ib, ig: (ig, 0, 0)),
            pl.BlockSpec((g_tile, 1, 3 * dk), lambda ib, ig: (ig, 0, 0)),
            pl.BlockSpec((g_tile, 1, dk), lambda ib, ig: (ig, 0, 0)),
        ],
        out_specs=pl.BlockSpec((g_tile, None, ROWS, dk),
                               lambda ib, ig: (ig, ib, 0, 0)),
        out_shape=jax.ShapeDtypeStruct((local_num, nb, ROWS, dk), jnp.float32),
        scratch_shapes=[pltpu.VMEM((g_tile, ROWS_PAD, 3 * dk), jnp.float32)],
        compiler_params=pltpu.CompilerParams(
            # Both axes are fully independent (no accumulation across either),
            # so both can be sharded across v7x's two TensorCores.
            dimension_semantics=("parallel", "parallel"),
            vmem_limit_bytes=vmem_limit),
    )(v_rows, gru_wih, gru_whh, gru_bi, gru_bhn)

    # (local_num, nb, (l, b_tile, ln), dk) -> (b, local_num*ln, l, dk); output
    # head index is i*ln + j, exactly as in the PyTorch concat over GRUs.
    out = out.reshape(local_num, nb, l, b_tile, ln, dk)
    out = jnp.transpose(out, (1, 3, 0, 4, 2, 5)).reshape(b, local_num * ln, l, dk)
    return out


# ----------------------------- RNNAttention forward -------------------------
def rnn_attention_forward(params, query, key, value, mask, *,
                          global_num, local_num, init_val):
    b, _, l, dk = query.shape
    v_l = value[:, global_num:]

    p_attn_g = None
    v_g = None
    if global_num > 0:
        q_g = query[:, :global_num]
        k_g = key[:, :global_num]
        v_gin = value[:, :global_num]
        assert mask.size == l * l  # module broadcasts one (l, l) mask over (b, heads)
        mask2d = mask.reshape(l, l)
        v_g, p_attn_g = global_attention(q_g, k_g, v_gin, mask2d)

    # As in the PyTorch module, each GRU i consumes ALL local heads' windowed
    # values and contributes (b, local_num, l, dk) -> local_num**2 output heads.
    v_l_out = fused_local_gru(
        v_l, params["gru_wih"], params["gru_whh"],
        params["gru_bi"], params["gru_bhn"], init_val=init_val)

    if global_num > 0:
        return jnp.concatenate([v_g, v_l_out], axis=1), (p_attn_g, None)
    return v_l_out, None


def pack_gru_params(gru_params, dk):
    """PyTorch (3*dk, dk)/(3*dk,) GRU params -> stacked, gate-fused, pre-transposed.

    wih/whh : (local_num, dk, 3*dk)  so that x @ wih gives columns [r | z | n]
    bi      : (local_num, 1, 3*dk)   = [b_ir + b_hr, b_iz + b_hz, b_in]
    bhn     : (local_num, 1, dk)     = b_hn (stays inside r * (.))
    """
    wihs, whhs, bis, bhns = [], [], [], []
    for (w_ih, w_hh, b_ih, b_hh) in gru_params:
        wihs.append(jnp.transpose(w_ih.reshape(3, dk, dk), (2, 0, 1)).reshape(dk, 3 * dk))
        whhs.append(jnp.transpose(w_hh.reshape(3, dk, dk), (2, 0, 1)).reshape(dk, 3 * dk))
        b_i = b_ih.reshape(3, dk)
        b_h = b_hh.reshape(3, dk)
        bis.append(jnp.concatenate([b_i[0] + b_h[0],
                                    b_i[1] + b_h[1],
                                    b_i[2]]).reshape(1, 3 * dk))
        bhns.append(b_h[2].reshape(1, dk))
    return jnp.stack(wihs), jnp.stack(whhs), jnp.stack(bis), jnp.stack(bhns)


if __name__ == "__main__":
    # Small shapes consistent with the module:
    # b=2, heads=4 (2 global + 2 local "locker" heads), seq=max_position=8,
    # d_k=8, locker init_val=2  (GRU window length = init_val + 1 = 3).
    b, l, dk = 2, 8, 8
    global_num, local_num, init_val = 2, 2, 2
    h = global_num + local_num

    key0 = jax.random.PRNGKey(0)
    kq, kk, kv, kp = jax.random.split(key0, 4)
    query = jax.random.normal(kq, (b, h, l, dk), jnp.float32)
    key_t = jax.random.normal(kk, (b, h, l, dk), jnp.float32)
    value = jax.random.normal(kv, (b, h, l, dk), jnp.float32)
    mask = jnp.tril(jnp.ones((l, l), jnp.float32))[None, None]   # (1, 1, l, l)

    # Deterministic GRU parameters (PyTorch init: U(-1/sqrt(H), 1/sqrt(H))).
    bound = 1.0 / math.sqrt(dk)
    pkeys = jax.random.split(kp, local_num * 4)
    gru_params = []
    for i in range(local_num):
        w_ih = jax.random.uniform(pkeys[4 * i + 0], (3 * dk, dk), jnp.float32, -bound, bound)
        w_hh = jax.random.uniform(pkeys[4 * i + 1], (3 * dk, dk), jnp.float32, -bound, bound)
        b_ih = jax.random.uniform(pkeys[4 * i + 2], (3 * dk,), jnp.float32, -bound, bound)
        b_hh = jax.random.uniform(pkeys[4 * i + 3], (3 * dk,), jnp.float32, -bound, bound)
        gru_params.append((w_ih, w_hh, b_ih, b_hh))
    wih_s, whh_s, bi_s, bhn_s = pack_gru_params(gru_params, dk)
    params = {"gru_wih": wih_s, "gru_whh": whh_s,
              "gru_bi": bi_s, "gru_bhn": bhn_s}

    out, (p_attn_g, p_attn_l) = rnn_attention_forward(
        params, query, key_t, value, mask,
        global_num=global_num, local_num=local_num, init_val=init_val)

    jax.block_until_ready(out)
    jax.block_until_ready(p_attn_g)
    assert out.shape == (b, global_num + local_num * local_num, l, dk)
    assert p_attn_g.shape == (b, global_num, l, l)
    print("KERNEL_OK")
</pallas_src>

<mosaic_0001>
module attributes {stable_mosaic.version = 11 : i64} {
  func.func @_global_attn_kernel(%arg0: i32, %arg1: memref<2x8x8xbf16, #tpu.memory_space<vmem>>, %arg2: memref<2x8x8xbf16, #tpu.memory_space<vmem>>, %arg3: memref<2x8x8xbf16, #tpu.memory_space<vmem>>, %arg4: memref<8x8xf32, #tpu.memory_space<vmem>>, %arg5: memref<8x8xf32, #tpu.memory_space<vmem>>, %arg6: memref<2x8x8xf32, #tpu.memory_space<vmem>>, %arg7: memref<2x8x8xf32, #tpu.memory_space<vmem>>) attributes {dimension_semantics = [#tpu.dimension_semantics<parallel>], iteration_bounds = array<i64: 2>, scalar_prefetch = 0 : i64, scratch_operands = 0 : i64, tpu.core_type = #tpu.core_type<tc>, window_params = [{transform_indices = @transform_0, window_bounds = array<i64: 2, 8, 8>}, {transform_indices = @transform_1, window_bounds = array<i64: 2, 8, 8>}, {transform_indices = @transform_2, window_bounds = array<i64: 2, 8, 8>}, {pipeline_mode = #tpu.pipeline_mode<synchronous>, transform_indices = @transform_3, window_bounds = array<i64: 8, 8>}, {pipeline_mode = #tpu.pipeline_mode<synchronous>, transform_indices = @transform_4, window_bounds = array<i64: 8, 8>}, {transform_indices = @transform_5, window_bounds = array<i64: 2, 8, 8>}, {transform_indices = @transform_6, window_bounds = array<i64: 2, 8, 8>}]} {
    %c0 = arith.constant 0 : index
    %c0_0 = arith.constant 0 : index
    %c0_1 = arith.constant 0 : index
    %0 = vector.load %arg1[%c0, %c0_0, %c0_1] : memref<2x8x8xbf16, #tpu.memory_space<vmem>>, vector<2x8x8xbf16>
    %c0_2 = arith.constant 0 : index
    %c0_3 = arith.constant 0 : index
    %c0_4 = arith.constant 0 : index
    %1 = vector.load %arg2[%c0_2, %c0_3, %c0_4] : memref<2x8x8xbf16, #tpu.memory_space<vmem>>, vector<2x8x8xbf16>
    %c0_5 = arith.constant 0 : index
    %c0_6 = arith.constant 0 : index
    %c0_7 = arith.constant 0 : index
    %2 = vector.load %arg3[%c0_5, %c0_6, %c0_7] : memref<2x8x8xbf16, #tpu.memory_space<vmem>>, vector<2x8x8xbf16>
    %c0_8 = arith.constant 0 : index
    %c0_9 = arith.constant 0 : index
    %3 = vector.load %arg4[%c0_8, %c0_9] : memref<8x8xf32, #tpu.memory_space<vmem>>, vector<8x8xf32>
    %c0_10 = arith.constant 0 : index
    %c0_11 = arith.constant 0 : index
    %4 = vector.load %arg5[%c0_10, %c0_11] : memref<8x8xf32, #tpu.memory_space<vmem>>, vector<8x8xf32>
    "tpu.trace_start"() <{level = 10 : i32, message = "gqd,gkd->gqk"}> : () -> ()
    %cst = arith.constant dense<0.000000e+00> : vector<2x8x8xf32>
    %5 = tpu.matmul %0, %1, %cst {dimension_numbers = #tpu.dot_dimension_numbers<[2], [2], [1], [1], [0, 0, 0, 1, 1, 1], [0], [0]>} : vector<2x8x8xbf16>, vector<2x8x8xbf16>, vector<2x8x8xf32> -> vector<2x8x8xf32>
    "tpu.trace_stop"() : () -> ()
    %6 = vector.shape_cast %3 : vector<8x8xf32> to vector<1x8x8xf32>
    %7 = vector.broadcast %6 : vector<1x8x8xf32> to vector<2x8x8xf32>
    %8 = arith.mulf %5, %7 : vector<2x8x8xf32>
    %9 = vector.shape_cast %4 : vector<8x8xf32> to vector<1x8x8xf32>
    %10 = vector.broadcast %9 : vector<1x8x8xf32> to vector<2x8x8xf32>
    %11 = arith.addf %8, %10 : vector<2x8x8xf32>
    %cst_12 = arith.constant dense<0xFF800000> : vector<2x8xf32>
    %12 = vector.multi_reduction <maximumf>, %11, %cst_12 [2] : vector<2x8x8xf32> to vector<2x8xf32>
    %13 = vector.shape_cast %12 : vector<2x8xf32> to vector<2x8x1xf32>
    %14 = vector.broadcast %13 : vector<2x8x1xf32> to vector<2x8x8xf32>
    %15 = arith.subf %11, %14 : vector<2x8x8xf32>
    %16 = math.exp %15 : vector<2x8x8xf32>
    %cst_13 = arith.constant dense<0.000000e+00> : vector<2x8xf32>
    %17 = vector.multi_reduction <add>, %16, %cst_13 [2] : vector<2x8x8xf32> to vector<2x8xf32>
    %18 = vector.shape_cast %17 : vector<2x8xf32> to vector<2x8x1xf32>
    %19 = vector.broadcast %18 : vector<2x8x1xf32> to vector<2x8x8xf32>
    %20 = arith.divf %16, %19 : vector<2x8x8xf32>
    %21 = arith.truncf %20 : vector<2x8x8xf32> to vector<2x8x8xbf16>
    "tpu.trace_start"() <{level = 10 : i32, message = "gqk,gkd->gqd"}> : () -> ()
    %cst_14 = arith.constant dense<0.000000e+00> : vector<2x8x8xf32>
    %22 = tpu.matmul %21, %2, %cst_14 {dimension_numbers = #tpu.dot_dimension_numbers<[2], [1], [1], [2], [0, 0, 0, 1, 1, 2], [0], [0]>} : vector<2x8x8xbf16>, vector<2x8x8xbf16>, vector<2x8x8xf32> -> vector<2x8x8xf32>
    "tpu.trace_stop"() : () -> ()
    %c0_15 = arith.constant 0 : index
    %c0_16 = arith.constant 0 : index
    %c0_17 = arith.constant 0 : index
    %23 = vector.load %arg6[%c0_15, %c0_16, %c0_17] : memref<2x8x8xf32, #tpu.memory_space<vmem>>, vector<2x8x8xf32>
    tpu.vector_store %arg6[%c0_15, %c0_16, %c0_17], %22 {strides = array<i32>} : memref<2x8x8xf32, #tpu.memory_space<vmem>>, vector<2x8x8xf32>,
    %c0_18 = arith.constant 0 : index
    %c0_19 = arith.constant 0 : index
    %c0_20 = arith.constant 0 : index
    %24 = vector.load %arg7[%c0_18, %c0_19, %c0_20] : memref<2x8x8xf32, #tpu.memory_space<vmem>>, vector<2x8x8xf32>
    tpu.vector_store %arg7[%c0_18, %c0_19, %c0_20], %20 {strides = array<i32>} : memref<2x8x8xf32, #tpu.memory_space<vmem>>, vector<2x8x8xf32>,
    return
  }
  func.func @transform_0(%arg0: i32) -> (i32, i32, i32) {
    %c0_i32 = arith.constant 0 : i32
    %c0_i32_0 = arith.constant 0 : i32
    %c0_i32_1 = arith.constant 0 : i32
    return %arg0, %c0_i32, %c0_i32_0 : i32, i32, i32
  }
  func.func @transform_1(%arg0: i32) -> (i32, i32, i32) {
    %c0_i32 = arith.constant 0 : i32
    %c0_i32_0 = arith.constant 0 : i32
    %c0_i32_1 = arith.constant 0 : i32
    return %arg0, %c0_i32, %c0_i32_0 : i32, i32, i32
  }
  func.func @transform_2(%arg0: i32) -> (i32, i32, i32) {
    %c0_i32 = arith.constant 0 : i32
    %c0_i32_0 = arith.constant 0 : i32
    %c0_i32_1 = arith.constant 0 : i32
    return %arg0, %c0_i32, %c0_i32_0 : i32, i32, i32
  }
  func.func @transform_3(%arg0: i32) -> (i32, i32) {
    %c0_i32 = arith.constant 0 : i32
    %c0_i32_0 = arith.constant 0 : i32
    %c0_i32_1 = arith.constant 0 : i32
    return %c0_i32, %c0_i32_0 : i32, i32
  }
  func.func @transform_4(%arg0: i32) -> (i32, i32) {
    %c0_i32 = arith.constant 0 : i32
    %c0_i32_0 = arith.constant 0 : i32
    %c0_i32_1 = arith.constant 0 : i32
    return %c0_i32, %c0_i32_0 : i32, i32
  }
  func.func @transform_5(%arg0: i32) -> (i32, i32, i32) {
    %c0_i32 = arith.constant 0 : i32
    %c0_i32_0 = arith.constant 0 : i32
    %c0_i32_1 = arith.constant 0 : i32
    return %arg0, %c0_i32, %c0_i32_0 : i32, i32, i32
  }
  func.func @transform_6(%arg0: i32) -> (i32, i32, i32) {
    %c0_i32 = arith.constant 0 : i32
    %c0_i32_0 = arith.constant 0 : i32
    %c0_i32_1 = arith.constant 0 : i32
    return %arg0, %c0_i32, %c0_i32_0 : i32, i32, i32
  }
}

</mosaic_0001>

<llo_original>
// kernel: tpu_custom_call.1
$region0: #{tpu_custom_call.1}
  #allocation0 [shape = 'u32[]', space=smem, size = 0x4, offset = 0x4, fixed_abs, tag = 'smem constant byte address 0x4 - core index']
  #allocation1 [shape = 'u32[144,128]{1,0:T(1,128)}', space=vmem, size = 0x12000, scoped, tag = 'internal scratch']
  %s0 = inlined_call_operand.hbm [shape: bf16[4,8,8], index: 0, kind: input, shape index: {}]
  %s1 = inlined_call_operand.hbm [shape: bf16[4,8,8], index: 1, kind: input, shape index: {}]
  %s2 = inlined_call_operand.hbm [shape: bf16[4,8,8], index: 2, kind: input, shape index: {}]
  %s3 = inlined_call_operand.vmem [shape: f32[8,8], index: 3, kind: input, shape index: {}]
  %s4 = inlined_call_operand.hbm [shape: f32[8,8], index: 4, kind: input, shape index: {}]
  %s5 = inlined_call_operand.hbm [shape: f32[4,8,8], index: 5, kind: output, shape index: {0}]
  %s6 = inlined_call_operand.hbm [shape: f32[4,8,8], index: 6, kind: output, shape index: {1}]
  %7 = xla_tuple %s5, %s6
  %s8 = sld [smem:[#allocation0]]
  $region77: #{tpu_custom_call.1} parent=0
    _
  %s10 = ssub.s32 1, %s8
  %s11 = scalar_select 0, %s10, %s8
  $region1: #{tpu_custom_call.1} parent=0
    #allocation2 [shape = 'u8[8192]{0}', space=vmem, size = 0x2000, scoped, tag = 'input window, operand 0']
    #allocation3 [shape = 's32[2]{0}', space=sflag, size = 0x8, scoped, tag = 'scoped memory for tpu_custom_call.1']
    #allocation4 [shape = 's32[2]{0}', space=sflag, size = 0x8, scoped, tag = 'scoped memory for tpu_custom_call.1']
    #allocation5 [shape = 'u8[8192]{0}', space=vmem, size = 0x2000, scoped, tag = 'input window, operand 1']
    #allocation6 [shape = 's32[2]{0}', space=sflag, size = 0x8, scoped, tag = 'scoped memory for tpu_custom_call.1']
    #allocation7 [shape = 'u8[8192]{0}', space=vmem, size = 0x2000, scoped, tag = 'input window, operand 2']
    #allocation8 [shape = 'u8[4096]{0}', space=vmem, size = 0x1000, scoped, tag = 'input window, operand 4, single buffered']
    #allocation9 [shape = 's32[1]{0}', space=sflag, size = 0x4, scoped, tag = 'scoped memory for tpu_custom_call.1']
    #allocation10 [shape = 'u8[16384]{0}', space=vmem, size = 0x4000, scoped, tag = 'output window, operand 0']
    #allocation11 [shape = 'u8[16384]{0}', space=vmem, size = 0x4000, scoped, tag = 'output window, operand 1']
    #allocation12 [shape = 's32[2]{0}', space=sflag, size = 0x8, scoped, tag = 'scoped memory for tpu_custom_call.1']
    %12 = vsyncpa [#allocation3], 0
    %s13 = scalar_lea.sflag [#allocation3], 1
    %14 = vsyncpa %s13, 0
    %15 = vsyncpa [#allocation6], 0
    %s16 = scalar_lea.sflag [#allocation6], 1
    %17 = vsyncpa %s16, 0
    %18 = vsyncpa [#allocation9], 0
    %19 = vsyncpa [#allocation4], 0
    %s20 = scalar_lea.sflag [#allocation4], 1
    %21 = vsyncpa %s20, 0
    %22 = vsyncpa [#allocation12], 0
    %s23 = scalar_lea.sflag [#allocation12], 1
    %24 = vsyncpa %s23, 0
    loop: start=0, step=1, limit=4
    $region2: #{tpu_custom_call.1} parent=1 // loop_pre_header
      _
    $region3: #{tpu_custom_call.1} parent=1 // loop_header
      %s26 = sphi 0, %s30
      %p27 = scmp.ge.s32.totalorder %s26, 4
      %s36 = sphi 0, %s38
      %s39 = sphi 0, %s36
      %s40 = sphi 0, %s39
      %s56 = sphi 0, %s40
      %s62 = sphi 0, %s64
      %s65 = sphi 0, %s62
      %s66 = sphi 0, %s65
      %s82 = sphi 0, %s66
      %s88 = sphi 0, %s90
      %s91 = sphi 0, %s88
      %s92 = sphi 0, %s91
      %s108 = sphi 0, %s92
      %s112 = sphi 0, %s112
      %s114 = sphi 0, %s112
      %s115 = sphi 0, %s114
      %s129 = sphi 0, %s115
      %s133 = sphi 0, %s133
      %s135 = sphi 0, %s133
      %s136 = sphi 0, %s135
      %s150 = sphi 0, %s136
      %s156 = sphi 0, %s158
      %s159 = sphi 0, %s156
      %s160 = sphi 0, %s159
      %s176 = sphi 0, %s160
      %s182 = sphi 0, %s184
      %s185 = sphi 0, %s182
      %s186 = sphi 0, %s185
      %s202 = sphi 0, %s186
    $region4: #{tpu_custom_call.1} parent=1 // loop_header_branch
      %29 = sbr.rel (%p27) target = $region8
    $region5: #{tpu_custom_call.1} parent=1 // loop_body
      %s31 = ssub.s32 %s26, 1
      %s32 = ssub.s32 %s26, 2
      %s33 = sadd.s32 %s26, 1
      %s34 = ssub.s32 %s26, %s33
      %p35 = scmp.eq.s32.totalorder %s34, 0
      %s37 = sadd.s32 %s36, 1
      %s38 = scalar_select %p35, %s36, %s37
      %p41 = pneg %p35
      %p42 = scmp.eq.s32.totalorder %s26, 1
      %p43 = por %p41, %p42
      %p44 = scmp.ne.s32.totalorder %s36, %s39
      %p45 = scmp.eq.s32.totalorder %s26, 0
      %p46 = por %p44, %p45
      %p47 = scmp.ne.s32.totalorder %s36, %s39
      %p48 = scmp.eq.s32.totalorder %s31, 1
      %p49 = por %p47, %p48
      %p50 = scmp.ne.s32.totalorder %s39, %s40
      %p51 = scmp.eq.s32.totalorder %s31, 0
      %p52 = por %p50, %p51
      %p53 = scmp.ne.s32.totalorder %s39, %s40
      %p54 = scmp.eq.s32.totalorder %s32, 1
      %p55 = por %p53, %p54
      %p57 = scmp.ne.s32.totalorder %s40, %s56
      %p58 = scmp.eq.s32.totalorder %s32, 0
      %p59 = por %p57, %p58
      %s60 = ssub.s32 %s26, %s33
      %p61 = scmp.eq.s32.totalorder %s60, 0
      %s63 = sadd.s32 %s62, 1
      %s64 = scalar_select %p61, %s62, %s63
      %p67 = pneg %p61
      %p68 = scmp.eq.s32.totalorder %s26, 1
      %p69 = por %p67, %p68
      %p70 = scmp.ne.s32.totalorder %s62, %s65
      %p71 = scmp.eq.s32.totalorder %s26, 0
      %p72 = por %p70, %p71
      %p73 = scmp.ne.s32.totalorder %s62, %s65
      %p74 = scmp.eq.s32.totalorder %s31, 1
      %p75 = por %p73, %p74
      %p76 = scmp.ne.s32.totalorder %s65, %s66
      %p77 = scmp.eq.s32.totalorder %s31, 0
      %p78 = por %p76, %p77
      %p79 = scmp.ne.s32.totalorder %s65, %s66
      %p80 = scmp.eq.s32.totalorder %s32, 1
      %p81 = por %p79, %p80
      %p83 = scmp.ne.s32.totalorder %s66, %s82
      %p84 = scmp.eq.s32.totalorder %s32, 0
      %p85 = por %p83, %p84
      %s86 = ssub.s32 %s26, %s33
      %p87 = scmp.eq.s32.totalorder %s86, 0
      %s89 = sadd.s32 %s88, 1
      %s90 = scalar_select %p87, %s88, %s89
      %p93 = pneg %p87
      %p94 = scmp.eq.s32.totalorder %s26, 1
      %p95 = por %p93, %p94
      %p96 = scmp.ne.s32.totalorder %s88, %s91
      %p97 = scmp.eq.s32.totalorder %s26, 0
      %p98 = por %p96, %p97
      %p99 = scmp.ne.s32.totalorder %s88, %s91
      %p100 = scmp.eq.s32.totalorder %s31, 1
      %p101 = por %p99, %p100
      %p102 = scmp.ne.s32.totalorder %s91, %s92
      %p103 = scmp.eq.s32.totalorder %s31, 0
      %p104 = por %p102, %p103
      %p105 = scmp.ne.s32.totalorder %s91, %s92
      %p106 = scmp.eq.s32.totalorder %s32, 1
      %p107 = por %p105, %p106
      %p109 = scmp.ne.s32.totalorder %s92, %s108
      %p110 = scmp.eq.s32.totalorder %s32, 0
      %p111 = por %p109, %p110
      %s113 = sadd.s32 %s112, 1
      %p116 = scmp.eq.s32.totalorder %s26, 1
      %p117 = scmp.ne.s32.totalorder %s112, %s114
      %p118 = scmp.eq.s32.totalorder %s26, 0
      %p119 = por %p117, %p118
      %p120 = scmp.ne.s32.totalorder %s112, %s114
      %p121 = scmp.eq.s32.totalorder %s31, 1
      %p122 = por %p120, %p121
      %p123 = scmp.ne.s32.totalorder %s114, %s115
      %p124 = scmp.eq.s32.totalorder %s31, 0
      %p125 = por %p123, %p124
      %p126 = scmp.ne.s32.totalorder %s114, %s115
      %p127 = scmp.eq.s32.totalorder %s32, 1
      %p128 = por %p126, %p127
      %p130 = scmp.ne.s32.totalorder %s115, %s129
      %p131 = scmp.eq.s32.totalorder %s32, 0
      %p132 = por %p130, %p131
      %s134 = sadd.s32 %s133, 1
      %p137 = scmp.eq.s32.totalorder %s26, 1
      %p138 = scmp.ne.s32.totalorder %s133, %s135
      %p139 = scmp.eq.s32.totalorder %s26, 0
      %p140 = por %p138, %p139
      %p141 = scmp.ne.s32.totalorder %s133, %s135
      %p142 = scmp.eq.s32.totalorder %s31, 1
      %p143 = por %p141, %p142
      %p144 = scmp.ne.s32.totalorder %s135, %s136
      %p145 = scmp.eq.s32.totalorder %s31, 0
      %p146 = por %p144, %p145
      %p147 = scmp.ne.s32.totalorder %s135, %s136
      %p148 = scmp.eq.s32.totalorder %s32, 1
      %p149 = por %p147, %p148
      %p151 = scmp.ne.s32.totalorder %s136, %s150
      %p152 = scmp.eq.s32.totalorder %s32, 0
      %p153 = por %p151, %p152
      %s154 = ssub.s32 %s26, %s33
      %p155 = scmp.eq.s32.totalorder %s154, 0
      %s157 = sadd.s32 %s156, 1
      %s158 = scalar_select %p155, %s156, %s157
      %p161 = pneg %p155
      %p162 = scmp.eq.s32.totalorder %s26, 1
      %p163 = por %p161, %p162
      %p164 = scmp.ne.s32.totalorder %s156, %s159
      %p165 = scmp.eq.s32.totalorder %s26, 0
      %p166 = por %p164, %p165
      %p167 = scmp.ne.s32.totalorder %s156, %s159
      %p168 = scmp.eq.s32.totalorder %s31, 1
      %p169 = por %p167, %p168
      %p170 = scmp.ne.s32.totalorder %s159, %s160
      %p171 = scmp.eq.s32.totalorder %s31, 0
      %p172 = por %p170, %p171
      %p173 = scmp.ne.s32.totalorder %s159, %s160
      %p174 = scmp.eq.s32.totalorder %s32, 1
      %p175 = por %p173, %p174
      %p177 = scmp.ne.s32.totalorder %s160, %s176
      %p178 = scmp.eq.s32.totalorder %s32, 0
      %p179 = por %p177, %p178
      %s180 = ssub.s32 %s26, %s33
      %p181 = scmp.eq.s32.totalorder %s180, 0
      %s183 = sadd.s32 %s182, 1
      %s184 = scalar_select %p181, %s182, %s183
      %p187 = pneg %p181
      %p188 = scmp.eq.s32.totalorder %s26, 1
      %p189 = por %p187, %p188
      %p190 = scmp.ne.s32.totalorder %s182, %s185
      %p191 = scmp.eq.s32.totalorder %s26, 0
      %p192 = por %p190, %p191
      %p193 = scmp.ne.s32.totalorder %s182, %s185
      %p194 = scmp.eq.s32.totalorder %s31, 1
      %p195 = por %p193, %p194
      %p196 = scmp.ne.s32.totalorder %s185, %s186
      %p197 = scmp.eq.s32.totalorder %s31, 0
      %p198 = por %p196, %p197
      %p199 = scmp.ne.s32.totalorder %s185, %s186
      %p200 = scmp.eq.s32.totalorder %s32, 1
      %p201 = por %p199, %p200
      %p203 = scmp.ne.s32.totalorder %s186, %s202
      %p204 = scmp.eq.s32.totalorder %s32, 0
      %p205 = por %p203, %p204
      %p206 = scmp.le.s32.totalorder 1, %s26
      %p207 = scmp.lt.s32.totalorder %s26, 3
      %p208 = pnand %p206, %p207
      %p209 = pneg %p208
      // Predicated region
      $region9: #{tpu_custom_call.1} parent=5 // pred_check
        _
      $region10: #{tpu_custom_call.1} parent=5 // pred_check_branch
        %211 = sbr.rel (%p208) target = $region12
      $region11: #{tpu_custom_call.1} parent=5 // pred_region
        %s212 = ssub.s32 %s26, 1
        // Predicated region
        $region13: #{tpu_custom_call.1} parent=11 // pred_check
          %p213 = pneg %p125
        $region14: #{tpu_custom_call.1} parent=11 // pred_check_branch
          %215 = sbr.rel (%p213) target = $region16
        $region15: #{tpu_custom_call.1} parent=11 // pred_region
          _
        $region16: #{tpu_custom_call.1} parent=11 // pred_fallthru
          _
        // Predicated region
        $region17: #{tpu_custom_call.1} parent=11 // pred_check
          %p216 = pneg %p146
        $region18: #{tpu_custom_call.1} parent=11 // pred_check_branch
          %218 = sbr.rel (%p216) target = $region20
        $region19: #{tpu_custom_call.1} parent=11 // pred_region
          %s220 = ssub.s32 128, 128
          %221 = vsyncadd [#allocation9], %s220
          %s223 = sshll.u32 [#allocation8], 4
          %s224 = int_to_ptr.vmem [resolvable:$true] %s223
          %226 = dma.hbm_to_vmem [thread:$0]  %s4, 128, %s224, [#allocation9]
        $region20: #{tpu_custom_call.1} parent=11 // pred_fallthru
          _
      $region12: #{tpu_custom_call.1} parent=5 // pred_fallthru
        _
      %p227 = scmp.lt.s32.totalorder %s26, 2
      // Predicated region
      $region21: #{tpu_custom_call.1} parent=5 // pred_check
        %p228 = pneg %p227
      $region22: #{tpu_custom_call.1} parent=5 // pred_check_branch
        %230 = sbr.rel (%p228) target = $region24
      $region23: #{tpu_custom_call.1} parent=5 // pred_region
        // Predicated region
        $region25: #{tpu_custom_call.1} parent=23 // pred_check
          %p231 = pneg %p46
        $region26: #{tpu_custom_call.1} parent=23 // pred_check_branch
          %233 = sbr.rel (%p231) target = $region28
        $region27: #{tpu_custom_call.1} parent=23 // pred_region
          %s234 = sand.u32 %s36, 1
          %s235 = scalar_lea.sflag [#allocation3], %s234
          %s236 = sand.u32 %s36, 1
          %s237 = smul.addr %s236, 8
          %s238 = scalar_lea.vmem [#allocation2], %s237
          %s239 = smul.u32 2, %s26
          %s241 = ssub.s32 128, 128
          %242 = vsyncadd %s235, %s241
          %s243 = smul.addr %s239, 64
          %s244 = scalar_lea.hbm %s0, %s243
          %s245 = sshll.u32 %s238, 4
          %s246 = int_to_ptr.vmem [resolvable:$true] %s245
          %251 = dma.hbm_to_vmem [thread:$0]  %s244, 128, %s246, %s235, 64, 64, 4
        $region28: #{tpu_custom_call.1} parent=23 // pred_fallthru
          _
        // Predicated region
        $region29: #{tpu_custom_call.1} parent=23 // pred_check
          %p252 = pneg %p72
        $region30: #{tpu_custom_call.1} parent=23 // pred_check_branch
          %254 = sbr.rel (%p252) target = $region32
        $region31: #{tpu_custom_call.1} parent=23 // pred_region
          %s255 = sand.u32 %s26, 1
          %s256 = scalar_lea.sflag [#allocation6], %s255
          %s257 = sand.u32 %s62, 1
          %s258 = smul.addr %s257, 8
          %s259 = scalar_lea.vmem [#allocation5], %s258
          %s260 = smul.u32 2, %s26
          %s262 = ssub.s32 128, 128
          %263 = vsyncadd %s256, %s262
          %s264 = smul.addr %s260, 64
          %s265 = scalar_lea.hbm %s1, %s264
          %s266 = sshll.u32 %s259, 4
          %s267 = int_to_ptr.vmem [resolvable:$true] %s266
          %272 = dma.hbm_to_vmem [thread:$0]  %s265, 128, %s267, %s256, 64, 64, 4
        $region32: #{tpu_custom_call.1} parent=23 // pred_fallthru
          _
        // Predicated region
        $region33: #{tpu_custom_call.1} parent=23 // pred_check
          %p273 = pneg %p98
        $region34: #{tpu_custom_call.1} parent=23 // pred_check_branch
          %275 = sbr.rel (%p273) target = $region36
        $region35: #{tpu_custom_call.1} parent=23 // pred_region
          %s276 = sand.u32 %s26, 1
          %s277 = scalar_lea.sflag [#allocation6], %s276
          %s278 = sand.u32 %s88, 1
          %s279 = smul.addr %s278, 8
          %s280 = scalar_lea.vmem [#allocation7], %s279
          %s281 = smul.u32 2, %s26
          %s283 = ssub.s32 128, 128
          %284 = vsyncadd %s277, %s283
          %s285 = smul.addr %s281, 64
          %s286 = scalar_lea.hbm %s2, %s285
          %s287 = sshll.u32 %s280, 4
          %s288 = int_to_ptr.vmem [resolvable:$true] %s287
          %293 = dma.hbm_to_vmem [thread:$0]  %s286, 128, %s288, %s277, 64, 64, 4
        $region36: #{tpu_custom_call.1} parent=23 // pred_fallthru
          _
      $region24: #{tpu_custom_call.1} parent=5 // pred_fallthru
        _
      %p294 = scmp.le.s32.totalorder 1, %s26
      %p295 = scmp.lt.s32.totalorder %s26, 3
      %p296 = pnand %p294, %p295
      %p297 = pneg %p296
      // Predicated region
      $region37: #{tpu_custom_call.1} parent=5 // pred_check
        _
      $region38: #{tpu_custom_call.1} parent=5 // pred_check_branch
        %299 = sbr.rel (%p296) target = $region40
      $region39: #{tpu_custom_call.1} parent=5 // pred_region
        %s300 = ssub.s32 %s26, 1
        %s301 = sand.u32 %s39, 1
        %s302 = scalar_lea.sflag [#allocation3], %s301
        %s303 = sand.u32 %s39, 1
        %s304 = smul.addr %s303, 8
        %s305 = scalar_lea.vmem [#allocation2], %s304
        // Predicated region
        $region41: #{tpu_custom_call.1} parent=39 // pred_check
          %p306 = pneg %p52
        $region42: #{tpu_custom_call.1} parent=39 // pred_check_branch
          %308 = sbr.rel (%p306) target = $region44
        $region43: #{tpu_custom_call.1} parent=39 // pred_region
          %309 = dma.done %s302, 128
        $region44: #{tpu_custom_call.1} parent=39 // pred_fallthru
          _
        %s310 = sand.u32 %s31, 1
        %s311 = scalar_lea.sflag [#allocation6], %s310
        %s312 = sand.u32 %s65, 1
        %s313 = smul.addr %s312, 8
        %s314 = scalar_lea.vmem [#allocation5], %s313
        // Predicated region
        $region45: #{tpu_custom_call.1} parent=39 // pred_check
          %p315 = pneg %p78
        $region46: #{tpu_custom_call.1} parent=39 // pred_check_branch
          %317 = sbr.rel (%p315) target = $region48
        $region47: #{tpu_custom_call.1} parent=39 // pred_region
          %318 = dma.done %s311, 128
        $region48: #{tpu_custom_call.1} parent=39 // pred_fallthru
          _
        %s319 = sand.u32 %s31, 1
        %s320 = scalar_lea.sflag [#allocation6], %s319
        %s321 = sand.u32 %s91, 1
        %s322 = smul.addr %s321, 8
        %s323 = scalar_lea.vmem [#allocation7], %s322
        // Predicated region
        $region49: #{tpu_custom_call.1} parent=39 // pred_check
          %p324 = pneg %p104
        $region50: #{tpu_custom_call.1} parent=39 // pred_check_branch
          %326 = sbr.rel (%p324) target = $region52
        $region51: #{tpu_custom_call.1} parent=39 // pred_region
          %327 = dma.done %s320, 128
        $region52: #{tpu_custom_call.1} parent=39 // pred_fallthru
          _
        // Predicated region
        $region53: #{tpu_custom_call.1} parent=39 // pred_check
          %p328 = pneg %p146
        $region54: #{tpu_custom_call.1} parent=39 // pred_check_branch
          %330 = sbr.rel (%p328) target = $region56
        $region55: #{tpu_custom_call.1} parent=39 // pred_region
          %331 = dma.done [#allocation9], 128
        $region56: #{tpu_custom_call.1} parent=39 // pred_fallthru
          _
        %s332 = sand.u32 %s39, 1
        %s333 = scalar_lea.sflag [#allocation3], %s332
        %s334 = sand.u32 %s39, 1
        %s335 = smul.addr %s334, 8
        %s336 = scalar_lea.vmem [#allocation2], %s335
        %p337 = pneg %p52
        %p338 = pneg %p49
        %s339 = sand.u32 %s31, 1
        %s340 = scalar_lea.sflag [#allocation6], %s339
        %s341 = sand.u32 %s65, 1
        %s342 = smul.addr %s341, 8
        %s343 = scalar_lea.vmem [#allocation5], %s342
        %p344 = pneg %p78
        %p345 = pneg %p75
        %s346 = sand.u32 %s31, 1
        %s347 = scalar_lea.sflag [#allocation6], %s346
        %s348 = sand.u32 %s91, 1
        %s349 = smul.addr %s348, 8
        %s350 = scalar_lea.vmem [#allocation7], %s349
        %p351 = pneg %p104
        %p352 = pneg %p101
        %p353 = pneg %p125
        %p354 = pneg %p122
        %p355 = pneg %p146
        %p356 = pneg %p143
        %p357 = pneg %p172
        %p358 = pneg %p169
        %s359 = sand.u32 %s159, 1
        %s360 = scalar_lea.sflag [#allocation4], %s359
        %s361 = sand.u32 %s159, 1
        %s362 = smul.addr %s361, 16
        %s363 = scalar_lea.vmem [#allocation10], %s362
        %p364 = pneg %p198
        %p365 = pneg %p195
        %s366 = sand.u32 %s185, 1
        %s367 = scalar_lea.sflag [#allocation12], %s366
        %s368 = sand.u32 %s185, 1
        %s369 = smul.addr %s368, 16
        %s370 = scalar_lea.vmem [#allocation11], %s369
        %s371 = smul.u32 2, %s31
        %s372 = smul.u32 2, %s31
        %s373 = smul.u32 2, %s31
        %s374 = smul.u32 2, %s31
        %s375 = smul.u32 2, %s31
        %v377 = vld [vmem:[%s305] sm:$0xf]
        %v378 = vld [vmem:[%s305 + $0x4] sm:$0xf]
        %v379 = vld [vmem:[%s314] sm:$0xf]
        %v380 = vld [vmem:[%s314 + $0x4] sm:$0xf]
        %v381 = vld [vmem:[%s323] sm:$0xf]
        %v382 = vld [vmem:[%s323 + $0x4] sm:$0xf]
        %v383 = vld [vmem:[%s3] sm:$0xff]
        %v384 = vld [vmem:[#allocation8] sm:$0xff]
        %vm385 = vcmask 64512
        %v387 = vsel %vm385, %v377, 0
        %v390 = vsel %vm385, %v379, 0
        %392 = vmatprep.subr.bf16.mxu0 0
        %393 = vmatpush1.bf16.xpose.msra.mxu0 %v390
        %394 = vmatprep.subr.bf16.mxu0 0
        %395 = vmatpush1.bf16.xpose.msra.mxu0 0
        %396 = vmatprep.subr.bf16.mxu0 0
        %397 = vmatpush1.bf16.xpose.msra.mxu0 0
        %398 = vmatprep.subr.bf16.mxu0 0
        %399 = vmatpush1.bf16.xpose.msra.mxu0 0
        %400 = vmatprep.subr.bf16.mxu0 0
        %401 = vmatpush1.bf16.xpose.msra.mxu0 0
        %402 = vmatprep.subr.bf16.mxu0 0
        %403 = vmatpush1.bf16.xpose.msra.mxu0 0
        %404 = vmatprep.subr.bf16.mxu0 0
        %405 = vmatpush1.bf16.xpose.msra.mxu0 0
        %406 = vmatprep.subr.bf16.mxu0 0
        %407 = vmatpush1.bf16.xpose.msra.mxu0 0
        %408 = vmatprep.subr.bf16.mxu0 0
        %409 = vmatpush1.bf16.xpose.msra.mxu0 0
        %410 = vmatprep.subr.bf16.mxu0 0
        %411 = vmatpush1.bf16.xpose.msra.mxu0 0
        %412 = vmatprep.subr.bf16.mxu0 0
        %413 = vmatpush1.bf16.xpose.msra.mxu0 0
        %414 = vmatprep.subr.bf16.mxu0 0
        %415 = vmatpush1.bf16.xpose.msra.mxu0 0
        %416 = vmatprep.subr.bf16.mxu0 0
        %417 = vmatpush1.bf16.xpose.msra.mxu0 0
        %418 = vmatprep.subr.bf16.mxu0 0
        %419 = vmatpush1.bf16.xpose.msra.mxu0 0
        %420 = vmatprep.subr.bf16.mxu0 0
        %421 = vmatpush1.bf16.xpose.msra.mxu0 0
        %422 = vmatprep.subr.bf16.mxu0 0
        %423 = vmatpush1.bf16.xpose.msra.mxu0 0
        %424 = vmatprep.mubr.bf16.mxu0 0
        %425 = vmatmul.mubr.bf16.gmra.mrb[0].mxu0 %v387
        %v426 = vpop.f32.mrb[0].mxu0
        %v427 = vadd.f32 0.0, %v426
        %v428 = vpop.f32.mrb[0].mxu0
        %v429 = vpop.f32.mrb[0].mxu0
        %v430 = vpop.f32.mrb[0].mxu0
        %431 = vdwg.mxu0
        %v433 = vsel %vm385, %v378, 0
        %v436 = vsel %vm385, %v380, 0
        %438 = vmatprep.subr.bf16.mxu0 0
        %439 = vmatpush1.bf16.xpose.msra.mxu0 %v436
        %440 = vmatprep.subr.bf16.mxu0 0
        %441 = vmatpush1.bf16.xpose.msra.mxu0 0
        %442 = vmatprep.subr.bf16.mxu0 0
        %443 = vmatpush1.bf16.xpose.msra.mxu0 0
        %444 = vmatprep.subr.bf16.mxu0 0
        %445 = vmatpush1.bf16.xpose.msra.mxu0 0
        %446 = vmatprep.subr.bf16.mxu0 0
        %447 = vmatpush1.bf16.xpose.msra.mxu0 0
        %448 = vmatprep.subr.bf16.mxu0 0
        %449 = vmatpush1.bf16.xpose.msra.mxu0 0
        %450 = vmatprep.subr.bf16.mxu0 0
        %451 = vmatpush1.bf16.xpose.msra.mxu0 0
        %452 = vmatprep.subr.bf16.mxu0 0
        %453 = vmatpush1.bf16.xpose.msra.mxu0 0
        %454 = vmatprep.subr.bf16.mxu0 0
        %455 = vmatpush1.bf16.xpose.msra.mxu0 0
        %456 = vmatprep.subr.bf16.mxu0 0
        %457 = vmatpush1.bf16.xpose.msra.mxu0 0
        %458 = vmatprep.subr.bf16.mxu0 0
        %459 = vmatpush1.bf16.xpose.msra.mxu0 0
        %460 = vmatprep.subr.bf16.mxu0 0
        %461 = vmatpush1.bf16.xpose.msra.mxu0 0
        %462 = vmatprep.subr.bf16.mxu0 0
        %463 = vmatpush1.bf16.xpose.msra.mxu0 0
        %464 = vmatprep.subr.bf16.mxu0 0
        %465 = vmatpush1.bf16.xpose.msra.mxu0 0
        %466 = vmatprep.subr.bf16.mxu0 0
        %467 = vmatpush1.bf16.xpose.msra.mxu0 0
        %468 = vmatprep.subr.bf16.mxu0 0
        %469 = vmatpush1.bf16.xpose.msra.mxu0 0
        %470 = vmatprep.mubr.bf16.mxu0 0
        %471 = vmatmul.mubr.bf16.gmra.mrb[0].mxu0 %v433
        %v472 = vpop.f32.mrb[0].mxu0
        %v473 = vadd.f32 0.0, %v472
        %v474 = vpop.f32.mrb[0].mxu0
        %v475 = vpop.f32.mrb[0].mxu0
        %v476 = vpop.f32.mrb[0].mxu0
        %477 = vdwg.mxu0
        %v478 = vmul.f32 %v427, %v383
        %v479 = vmul.f32 %v473, %v383
        %v480 = vadd.f32 %v478, %v384
        %v481 = vadd.f32 %v479, %v384
        %v482 = vsel %vm385, %v480, -inf
        %483 = vmax.xlane.f32.xlu0 %v482
        %v484 = vpop.xlane.xlu0 %483
        %v485 = vsel %vm385, %v481, -inf
        %486 = vmax.xlane.f32.xlu0 %v485
        %v487 = vpop.xlane.xlu0 %486
        %v488 = vsub.f32 %v480, %v484
        %v489 = vsub.f32 %v481, %v487
        %v490 = vmul.f32 %v488, 1.442695
        %v491 = vpow.pop %v490
        %v492 = vmul.f32 %v489, 1.442695
        %v493 = vpow.pop %v492
        %v494 = vsel %vm385, %v491, 0.0
        %495 = vadd.xlane.f32.xlu0 %v494
        %v496 = vpop.xlane.xlu0 %495
        %v497 = vsel %vm385, %v493, 0.0
        %498 = vadd.xlane.f32.xlu0 %v497
        %v499 = vpop.xlane.xlu0 %498
        %v500 = vrcp.pop %v496
        %v501 = vmul.f32 %v491, %v500
        %v502 = vrcp.pop %v499
        %v503 = vmul.f32 %v493, %v502
        %v504 = vpack.c.bf16 %v501, %v501
        %v505 = vpack.c.bf16 %v503, %v503
        %v507 = vsel %vm385, %v504, 0
        %vm509 = vcmask 1043456
        %v511 = vsel %vm509, %v381, 0
        %513 = vmatprep.subr.bf16.mxu0 0
        %514 = vmatpush1.bf16.msra.mxu0 %v511
        %515 = vmatprep.subr.bf16.mxu0 0
        %516 = vmatpush1.bf16.msra.mxu0 0
        %517 = vmatprep.subr.bf16.mxu0 0
        %518 = vmatpush1.bf16.msra.mxu0 0
        %519 = vmatprep.subr.bf16.mxu0 0
        %520 = vmatpush1.bf16.msra.mxu0 0
        %521 = vmatprep.subr.bf16.mxu0 0
        %522 = vmatpush1.bf16.msra.mxu0 0
        %523 = vmatprep.subr.bf16.mxu0 0
        %524 = vmatpush1.bf16.msra.mxu0 0
        %525 = vmatprep.subr.bf16.mxu0 0
        %526 = vmatpush1.bf16.msra.mxu0 0
        %527 = vmatprep.subr.bf16.mxu0 0
        %528 = vmatpush1.bf16.msra.mxu0 0
        %529 = vmatprep.subr.bf16.mxu0 0
        %530 = vmatpush1.bf16.msra.mxu0 0
        %531 = vmatprep.subr.bf16.mxu0 0
        %532 = vmatpush1.bf16.msra.mxu0 0
        %533 = vmatprep.subr.bf16.mxu0 0
        %534 = vmatpush1.bf16.msra.mxu0 0
        %535 = vmatprep.subr.bf16.mxu0 0
        %536 = vmatpush1.bf16.msra.mxu0 0
        %537 = vmatprep.subr.bf16.mxu0 0
        %538 = vmatpush1.bf16.msra.mxu0 0
        %539 = vmatprep.subr.bf16.mxu0 0
        %540 = vmatpush1.bf16.msra.mxu0 0
        %541 = vmatprep.subr.bf16.mxu0 0
        %542 = vmatpush1.bf16.msra.mxu0 0
        %543 = vmatprep.subr.bf16.mxu0 0
        %544 = vmatpush1.bf16.msra.mxu0 0
        %545 = vmatprep.mubr.bf16.mxu0 0
        %546 = vmatmul.mubr.bf16.gmra.mrb[0].mxu0 %v507
        %v547 = vpop.f32.mrb[0].mxu0
        %v548 = vadd.f32 0.0, %v547
        %v549 = vpop.f32.mrb[0].mxu0
        %v550 = vpop.f32.mrb[0].mxu0
        %v551 = vpop.f32.mrb[0].mxu0
        %552 = vdwg.mxu0
        %v554 = vsel %vm385, %v505, 0
        %v557 = vsel %vm509, %v382, 0
        %559 = vmatprep.subr.bf16.mxu0 0
        %560 = vmatpush1.bf16.msra.mxu0 %v557
        %561 = vmatprep.subr.bf16.mxu0 0
        %562 = vmatpush1.bf16.msra.mxu0 0
        %563 = vmatprep.subr.bf16.mxu0 0
        %564 = vmatpush1.bf16.msra.mxu0 0
        %565 = vmatprep.subr.bf16.mxu0 0
        %566 = vmatpush1.bf16.msra.mxu0 0
        %567 = vmatprep.subr.bf16.mxu0 0
        %568 = vmatpush1.bf16.msra.mxu0 0
        %569 = vmatprep.subr.bf16.mxu0 0
        %570 = vmatpush1.bf16.msra.mxu0 0
        %571 = vmatprep.subr.bf16.mxu0 0
        %572 = vmatpush1.bf16.msra.mxu0 0
        %573 = vmatprep.subr.bf16.mxu0 0
        %574 = vmatpush1.bf16.msra.mxu0 0
        %575 = vmatprep.subr.bf16.mxu0 0
        %576 = vmatpush1.bf16.msra.mxu0 0
        %577 = vmatprep.subr.bf16.mxu0 0
        %578 = vmatpush1.bf16.msra.mxu0 0
        %579 = vmatprep.subr.bf16.mxu0 0
        %580 = vmatpush1.bf16.msra.mxu0 0
        %581 = vmatprep.subr.bf16.mxu0 0
        %582 = vmatpush1.bf16.msra.mxu0 0
        %583 = vmatprep.subr.bf16.mxu0 0
        %584 = vmatpush1.bf16.msra.mxu0 0
        %585 = vmatprep.subr.bf16.mxu0 0
        %586 = vmatpush1.bf16.msra.mxu0 0
        %587 = vmatprep.subr.bf16.mxu0 0
        %588 = vmatpush1.bf16.msra.mxu0 0
        %589 = vmatprep.subr.bf16.mxu0 0
        %590 = vmatpush1.bf16.msra.mxu0 0
        %591 = vmatprep.mubr.bf16.mxu0 0
        %592 = vmatmul.mubr.bf16.gmra.mrb[0].mxu0 %v554
        %v593 = vpop.f32.mrb[0].mxu0
        %v594 = vadd.f32 0.0, %v593
        %v595 = vpop.f32.mrb[0].mxu0
        %v596 = vpop.f32.mrb[0].mxu0
        %v597 = vpop.f32.mrb[0].mxu0
        %598 = vdwg.mxu0
        %599 = vst.msk [vmem:[%s363] sm:$0xff] %vm385, %v548
        %600 = vst.msk [vmem:[%s363 + $0x8] sm:$0xff] %vm385, %v594
        %601 = vst.msk [vmem:[%s370] sm:$0xff] %vm385, %v501
        %602 = vst.msk [vmem:[%s370 + $0x8] sm:$0xff] %vm385, %v503
        %s603 = sand.u32 %s159, 1
        %s604 = scalar_lea.sflag [#allocation4], %s603
        %s605 = sand.u32 %s159, 1
        %s606 = smul.addr %s605, 16
        %s607 = scalar_lea.vmem [#allocation10], %s606
        %s608 = sand.u32 %s185, 1
        %s609 = scalar_lea.sflag [#allocation12], %s608
        %s610 = sand.u32 %s185, 1
        %s611 = smul.addr %s610, 16
        %s612 = scalar_lea.vmem [#allocation11], %s611
        // Predicated region
        $region57: #{tpu_custom_call.1} parent=39 // pred_check
          %p613 = pneg %p169
        $region58: #{tpu_custom_call.1} parent=39 // pred_check_branch
          %615 = sbr.rel (%p613) target = $region60
        $region59: #{tpu_custom_call.1} parent=39 // pred_region
          %s616 = smul.u32 2, %s31
          %s618 = ssub.s32 256, 256
          %619 = vsyncadd %s604, %s618
          %s620 = smul.addr %s616, 128
          %s621 = scalar_lea.hbm %s5, %s620
          %s622 = sshll.u32 %s607, 4
          %s623 = int_to_ptr.vmem [resolvable:$true] %s622
          %628 = dma.vmem_to_hbm [thread:$0]  %s623, 256, %s621, %s604, 128, 128, 8
        $region60: #{tpu_custom_call.1} parent=39 // pred_fallthru
          _
        // Predicated region
        $region61: #{tpu_custom_call.1} parent=39 // pred_check
          %p629 = pneg %p195
        $region62: #{tpu_custom_call.1} parent=39 // pred_check_branch
          %631 = sbr.rel (%p629) target = $region64
        $region63: #{tpu_custom_call.1} parent=39 // pred_region
          %s632 = smul.u32 2, %s31
          %s634 = ssub.s32 256, 256
          %635 = vsyncadd %s609, %s634
          %s636 = smul.addr %s632, 128
          %s637 = scalar_lea.hbm %s6, %s636
          %s638 = sshll.u32 %s612, 4
          %s639 = int_to_ptr.vmem [resolvable:$true] %s638
          %644 = dma.vmem_to_hbm [thread:$0]  %s639, 256, %s637, %s609, 128, 128, 8
        $region64: #{tpu_custom_call.1} parent=39 // pred_fallthru
          _
      $region40: #{tpu_custom_call.1} parent=5 // pred_fallthru
        _
      %p645 = scmp.le.s32.totalorder 2, %s26
      // Predicated region
      $region65: #{tpu_custom_call.1} parent=5 // pred_check
        %p646 = pneg %p645
      $region66: #{tpu_custom_call.1} parent=5 // pred_check_branch
        %648 = sbr.rel (%p646) target = $region68
      $region67: #{tpu_custom_call.1} parent=5 // pred_region
        %s649 = ssub.s32 %s26, 2
        // Predicated region
        $region69: #{tpu_custom_call.1} parent=67 // pred_check
          %p650 = pneg %p175
        $region70: #{tpu_custom_call.1} parent=67 // pred_check_branch
          %652 = sbr.rel (%p650) target = $region72
        $region71: #{tpu_custom_call.1} parent=67 // pred_region
          %s653 = sand.u32 %s160, 1
          %s654 = scalar_lea.sflag [#allocation4], %s653
          %s655 = sand.u32 %s160, 1
          %s656 = smul.addr %s655, 16
          %s657 = scalar_lea.vmem [#allocation10], %s656
          %658 = dma.done %s654, 256
        $region72: #{tpu_custom_call.1} parent=67 // pred_fallthru
          _
        // Predicated region
        $region73: #{tpu_custom_call.1} parent=67 // pred_check
          %p659 = pneg %p201
        $region74: #{tpu_custom_call.1} parent=67 // pred_check_branch
          %661 = sbr.rel (%p659) target = $region76
        $region75: #{tpu_custom_call.1} parent=67 // pred_region
          %s662 = sand.u32 %s186, 1
          %s663 = scalar_lea.sflag [#allocation12], %s662
          %s664 = sand.u32 %s186, 1
          %s665 = smul.addr %s664, 16
          %s666 = scalar_lea.vmem [#allocation11], %s665
          %667 = dma.done %s663, 256
        $region76: #{tpu_custom_call.1} parent=67 // pred_fallthru
          _
      $region68: #{tpu_custom_call.1} parent=5 // pred_fallthru
        _
    $region6: #{tpu_custom_call.1} parent=1 // loop_footer
      %s30 = sadd.s32 1, %s26
    $region7: #{tpu_custom_call.1} parent=1 // loop_footer_branch
      %25 = sbr.rel target = $region3
    $region8: #{tpu_custom_call.1} parent=1 // loop_exit
      _
    %668 = vsyncpa [#allocation3], 1
    %s669 = scalar_lea.sflag [#allocation3], 1
    %670 = vsyncpa %s669, 1
    %671 = vsyncpa [#allocation6], 1
    %s672 = scalar_lea.sflag [#allocation6], 1
    %673 = vsyncpa %s672, 1
    %674 = vsyncpa [#allocation9], 1
    %675 = vsyncpa [#allocation4], 1
    %s676 = scalar_lea.sflag [#allocation4], 1
    %677 = vsyncpa %s676, 1
    %678 = vsyncpa [#allocation12], 1
    %s679 = scalar_lea.sflag [#allocation12], 1
    %680 = vsyncpa %s679, 1

</llo_original>
